<compile_context>
chip_gen: v7x
topology: tpu7x:2x2x1
jax: 0.10.0
libtpu: 0.0.40
codegen_flags: <defaults>
</compile_context>

<pallas_src>
import functools

import jax
import jax.numpy as jnp
from jax.experimental import pallas as pl
from jax.experimental.pallas import tpu as pltpu


def _round_up(x, m):
    return ((x + m - 1) // m) * m


def _q_kernel(z_ref, zae_ref, zig_ref, ct_ref, csq_ref,
              q_ref, qae_ref, qig_ref, *, v):
    """One (tn, D) tile of each embedding vs. all (padded) cluster centers."""
    ct = ct_ref[...]            # (D, Kp)   centers, pre-transposed
    csq = csq_ref[...]          # (1, Kp)   ||c||^2, pad columns hold 1e30

    def one(emb_ref, out_ref):
        x = emb_ref[...]                                           # (tn, D)
        x32 = x.astype(jnp.float32)
        x_sq = jnp.sum(x32 * x32, axis=1, keepdims=True)           # (tn, 1)

        # Cross term on the MXU: (tn, D) x (D, Kp) -> (tn, Kp), f32 accum.
        cross = jnp.dot(x, ct, preferred_element_type=jnp.float32)

        # ||x||^2 + ||c||^2 - 2 x.c  (clamped at 0 against cancellation).
        # Pad columns get ~1e30 -> q underflows to ~0, no explicit mask needed.
        dist2 = jnp.maximum(x_sq + csq - 2.0 * cross, 0.0)          # (tn, Kp)

        # Student's t kernel with `v` degrees of freedom.
        if v == 1.0:
            # exponent (v+1)/2 == 1 -> just the reciprocal, on the EUP.
            q = pl.reciprocal(1.0 + dist2, approx=True)
        else:
            # (1 + d2/v)^(-(v+1)/2) as a single log/exp pair on the EUP.
            q = jnp.exp((-(v + 1.0) * 0.5) * jnp.log(1.0 + dist2 * (1.0 / v)))

        # Row-normalize:  (q.t() / q.sum(1)).t()
        row_sum = jnp.sum(q, axis=1, keepdims=True)                 # (tn, 1)
        q = q * pl.reciprocal(row_sum, approx=True)
        out_ref[...] = q.astype(out_ref.dtype)

    one(z_ref, q_ref)
    one(zae_ref, qae_ref)
    one(zig_ref, qig_ref)


def q_distribution_forward(z, z_ae, z_igae, centers, v=1.0,
                           tn_max=1024, out_dtype=None):
    """Pallas equivalent of q_distribution.forward -> [q, q_ae, q_igae]."""
    N, D = z.shape
    K, Dc = centers.shape
    assert D == Dc and z_ae.shape == (N, D) and z_igae.shape == (N, D)

    if out_dtype is None:
        out_dtype = z.dtype

    # Sublane packing factor of the embedding dtype (8 f32 / 16 bf16 / 32 i8).
    itemsize = jnp.dtype(z.dtype).itemsize
    pack = 8 * (4 // itemsize)

    # Tile size: big, multiple of the pack factor, but leave >= 2 grid steps
    # when possible so the "parallel" axis shards across both v7x TensorCores.
    tn = min(tn_max, _round_up(max(pl.cdiv(N, 2), 1), pack))
    tn = max(tn, pack)
    grid_n = pl.cdiv(N, tn)       # last block may be partial; Pallas clips it.

    # Lane-dense cluster axis: pad K up to a multiple of 128.
    kp = _round_up(K, 128)
    # Centers pre-transposed once in XLA: (D, Kp), zero-padded columns.
    c_t = jnp.pad(centers, ((0, kp - K), (0, 0))).T                  # (D, Kp)
    # ||c||^2; dummy clusters get 1e30 so their q underflows to 0 in-kernel.
    csq = jnp.sum(centers.astype(jnp.float32) ** 2, axis=1)          # (K,)
    csq = jnp.concatenate(
        [csq, jnp.full((kp - K,), 1e30, dtype=jnp.float32)])[None, :]  # (1, Kp)

    emb_spec = pl.BlockSpec((tn, D), lambda i: (i, 0))
    out_spec = pl.BlockSpec((tn, kp), lambda i: (i, 0))

    out_struct = jax.ShapeDtypeStruct((N, kp), out_dtype)

    q, q_ae, q_igae = pl.pallas_call(
        functools.partial(_q_kernel, v=float(v)),
        out_shape=(out_struct, out_struct, out_struct),
        grid_spec=pltpu.PrefetchScalarGridSpec(
            num_scalar_prefetch=0,
            grid=(grid_n,),
            in_specs=[
                emb_spec,                                   # z tile
                emb_spec,                                   # z_ae tile
                emb_spec,                                   # z_igae tile
                pl.BlockSpec((D, kp), lambda i: (0, 0)),    # centers^T (all)
                pl.BlockSpec((1, kp), lambda i: (0, 0)),    # ||c||^2 (all)
            ],
            out_specs=[out_spec, out_spec, out_spec],
        ),
        compiler_params=pltpu.CompilerParams(
            dimension_semantics=("parallel",)),
    )(z, z_ae, z_igae, c_t, csq)

    # Drop the lane-padding columns.
    return [q[:, :K], q_ae[:, :K], q_igae[:, :K]]


def _q_reference(z, centers, v=1.0):
    d2 = jnp.sum((z[:, None, :] - centers[None, :, :]) ** 2, axis=2)
    q = 1.0 / (1.0 + d2 / v)
    q = q ** ((v + 1.0) / 2.0)
    return q / jnp.sum(q, axis=1, keepdims=True)


if __name__ == "__main__":
    # Small deterministic shapes: N samples, D hidden dims, K clusters.
    N, D, K = 16, 32, 4

    key = jax.random.PRNGKey(0)
    k1, k2, k3, k4 = jax.random.split(key, 4)
    z = jax.random.normal(k1, (N, D), dtype=jnp.float32)
    z_ae = jax.random.normal(k2, (N, D), dtype=jnp.float32)
    z_igae = jax.random.normal(k3, (N, D), dtype=jnp.float32)
    centers = jax.random.normal(k4, (K, D), dtype=jnp.float32)

    # Tolerances relaxed slightly: the row normalization (and the v=1 kernel
    # itself) uses the hardware approximate reciprocal.
    tol = 5e-3

    for v in (1.0, 2.0):  # v=1: pow-free vrcp path, v=2: general log/exp path
        outs = q_distribution_forward(z, z_ae, z_igae, centers, v)
        outs = [jax.block_until_ready(o) for o in outs]
        refs = [_q_reference(a, centers, v) for a in (z, z_ae, z_igae)]
        for got, ref in zip(outs, refs):
            assert got.shape == (N, K)
            assert jnp.allclose(got, ref, atol=tol, rtol=tol)
            assert jnp.allclose(jnp.sum(got, axis=1), 1.0, atol=tol)

    print("KERNEL_OK")
</pallas_src>

<mosaic_0001>
module attributes {stable_mosaic.version = 11 : i64} {
  func.func @_q_kernel(%arg0: i32, %arg1: memref<8x32xf32, #tpu.memory_space<vmem>>, %arg2: memref<8x32xf32, #tpu.memory_space<vmem>>, %arg3: memref<8x32xf32, #tpu.memory_space<vmem>>, %arg4: memref<32x128xf32, #tpu.memory_space<vmem>>, %arg5: memref<1x128xf32, #tpu.memory_space<vmem>>, %arg6: memref<8x128xf32, #tpu.memory_space<vmem>>, %arg7: memref<8x128xf32, #tpu.memory_space<vmem>>, %arg8: memref<8x128xf32, #tpu.memory_space<vmem>>) attributes {dimension_semantics = [#tpu.dimension_semantics<parallel>], iteration_bounds = array<i64: 2>, scalar_prefetch = 0 : i64, scratch_operands = 0 : i64, tpu.core_type = #tpu.core_type<tc>, window_params = [{transform_indices = @transform_0, window_bounds = array<i64: 8, 32>}, {transform_indices = @transform_1, window_bounds = array<i64: 8, 32>}, {transform_indices = @transform_2, window_bounds = array<i64: 8, 32>}, {pipeline_mode = #tpu.pipeline_mode<synchronous>, transform_indices = @transform_3, window_bounds = array<i64: 32, 128>}, {pipeline_mode = #tpu.pipeline_mode<synchronous>, transform_indices = @transform_4, window_bounds = array<i64: 1, 128>}, {transform_indices = @transform_5, window_bounds = array<i64: 8, 128>}, {transform_indices = @transform_6, window_bounds = array<i64: 8, 128>}, {transform_indices = @transform_7, window_bounds = array<i64: 8, 128>}]} {
    %c0 = arith.constant 0 : index
    %c0_0 = arith.constant 0 : index
    %0 = vector.load %arg4[%c0, %c0_0] : memref<32x128xf32, #tpu.memory_space<vmem>>, vector<32x128xf32>
    %c0_1 = arith.constant 0 : index
    %c0_2 = arith.constant 0 : index
    %1 = vector.load %arg5[%c0_1, %c0_2] : memref<1x128xf32, #tpu.memory_space<vmem>>, vector<1x128xf32>
    %c0_3 = arith.constant 0 : index
    %c0_4 = arith.constant 0 : index
    %2 = vector.load %arg1[%c0_3, %c0_4] : memref<8x32xf32, #tpu.memory_space<vmem>>, vector<8x32xf32>
    %3 = arith.mulf %2, %2 : vector<8x32xf32>
    %cst = arith.constant dense<0.000000e+00> : vector<8xf32>
    %4 = vector.multi_reduction <add>, %3, %cst [1] : vector<8x32xf32> to vector<8xf32>
    %5 = vector.shape_cast %4 : vector<8xf32> to vector<8x1xf32>
    %cst_5 = arith.constant dense<0.000000e+00> : vector<8x128xf32>
    %6 = tpu.matmul %2, %0, %cst_5 {dimension_numbers = #tpu.dot_dimension_numbers<[1], [0], [0], [1], [0, 0, 1, 1], [], []>} : vector<8x32xf32>, vector<32x128xf32>, vector<8x128xf32> -> vector<8x128xf32>
    %7 = vector.broadcast %5 : vector<8x1xf32> to vector<8x128xf32>
    %8 = vector.broadcast %1 : vector<1x128xf32> to vector<8x128xf32>
    %9 = arith.addf %7, %8 : vector<8x128xf32>
    %cst_6 = arith.constant 2.000000e+00 : f32
    %10 = vector.broadcast %cst_6 : f32 to vector<8x128xf32>
    %11 = arith.mulf %10, %6 : vector<8x128xf32>
    %12 = arith.subf %9, %11 : vector<8x128xf32>
    %cst_7 = arith.constant 0.000000e+00 : f32
    %13 = vector.broadcast %cst_7 : f32 to vector<8x128xf32>
    %14 = arith.maximumf %12, %13 : vector<8x128xf32>
    %cst_8 = arith.constant 1.000000e+00 : f32
    %15 = vector.broadcast %cst_8 : f32 to vector<8x128xf32>
    %16 = arith.addf %15, %14 : vector<8x128xf32>
    %17 = tpu.reciprocal %16 {approx = true} : vector<8x128xf32> -> vector<8x128xf32>
    %cst_9 = arith.constant dense<0.000000e+00> : vector<8xf32>
    %18 = vector.multi_reduction <add>, %17, %cst_9 [1] : vector<8x128xf32> to vector<8xf32>
    %19 = vector.shape_cast %18 : vector<8xf32> to vector<8x1xf32>
    %20 = tpu.reciprocal %19 {approx = true} : vector<8x1xf32> -> vector<8x1xf32>
    %21 = vector.broadcast %20 : vector<8x1xf32> to vector<8x128xf32>
    %22 = arith.mulf %17, %21 : vector<8x128xf32>
    %c0_10 = arith.constant 0 : index
    %c0_11 = arith.constant 0 : index
    %23 = vector.load %arg6[%c0_10, %c0_11] : memref<8x128xf32, #tpu.memory_space<vmem>>, vector<8x128xf32>
    tpu.vector_store %arg6[%c0_10, %c0_11], %22 {strides = array<i32>} : memref<8x128xf32, #tpu.memory_space<vmem>>, vector<8x128xf32>,
    %c0_12 = arith.constant 0 : index
    %c0_13 = arith.constant 0 : index
    %24 = vector.load %arg2[%c0_12, %c0_13] : memref<8x32xf32, #tpu.memory_space<vmem>>, vector<8x32xf32>
    %25 = arith.mulf %24, %24 : vector<8x32xf32>
    %cst_14 = arith.constant dense<0.000000e+00> : vector<8xf32>
    %26 = vector.multi_reduction <add>, %25, %cst_14 [1] : vector<8x32xf32> to vector<8xf32>
    %27 = vector.shape_cast %26 : vector<8xf32> to vector<8x1xf32>
    %cst_15 = arith.constant dense<0.000000e+00> : vector<8x128xf32>
    %28 = tpu.matmul %24, %0, %cst_15 {dimension_numbers = #tpu.dot_dimension_numbers<[1], [0], [0], [1], [0, 0, 1, 1], [], []>} : vector<8x32xf32>, vector<32x128xf32>, vector<8x128xf32> -> vector<8x128xf32>
    %29 = vector.broadcast %27 : vector<8x1xf32> to vector<8x128xf32>
    %30 = vector.broadcast %1 : vector<1x128xf32> to vector<8x128xf32>
    %31 = arith.addf %29, %30 : vector<8x128xf32>
    %cst_16 = arith.constant 2.000000e+00 : f32
    %32 = vector.broadcast %cst_16 : f32 to vector<8x128xf32>
    %33 = arith.mulf %32, %28 : vector<8x128xf32>
    %34 = arith.subf %31, %33 : vector<8x128xf32>
    %cst_17 = arith.constant 0.000000e+00 : f32
    %35 = vector.broadcast %cst_17 : f32 to vector<8x128xf32>
    %36 = arith.maximumf %34, %35 : vector<8x128xf32>
    %cst_18 = arith.constant 1.000000e+00 : f32
    %37 = vector.broadcast %cst_18 : f32 to vector<8x128xf32>
    %38 = arith.addf %37, %36 : vector<8x128xf32>
    %39 = tpu.reciprocal %38 {approx = true} : vector<8x128xf32> -> vector<8x128xf32>
    %cst_19 = arith.constant dense<0.000000e+00> : vector<8xf32>
    %40 = vector.multi_reduction <add>, %39, %cst_19 [1] : vector<8x128xf32> to vector<8xf32>
    %41 = vector.shape_cast %40 : vector<8xf32> to vector<8x1xf32>
    %42 = tpu.reciprocal %41 {approx = true} : vector<8x1xf32> -> vector<8x1xf32>
    %43 = vector.broadcast %42 : vector<8x1xf32> to vector<8x128xf32>
    %44 = arith.mulf %39, %43 : vector<8x128xf32>
    %c0_20 = arith.constant 0 : index
    %c0_21 = arith.constant 0 : index
    %45 = vector.load %arg7[%c0_20, %c0_21] : memref<8x128xf32, #tpu.memory_space<vmem>>, vector<8x128xf32>
    tpu.vector_store %arg7[%c0_20, %c0_21], %44 {strides = array<i32>} : memref<8x128xf32, #tpu.memory_space<vmem>>, vector<8x128xf32>,
    %c0_22 = arith.constant 0 : index
    %c0_23 = arith.constant 0 : index
    %46 = vector.load %arg3[%c0_22, %c0_23] : memref<8x32xf32, #tpu.memory_space<vmem>>, vector<8x32xf32>
    %47 = arith.mulf %46, %46 : vector<8x32xf32>
    %cst_24 = arith.constant dense<0.000000e+00> : vector<8xf32>
    %48 = vector.multi_reduction <add>, %47, %cst_24 [1] : vector<8x32xf32> to vector<8xf32>
    %49 = vector.shape_cast %48 : vector<8xf32> to vector<8x1xf32>
    %cst_25 = arith.constant dense<0.000000e+00> : vector<8x128xf32>
    %50 = tpu.matmul %46, %0, %cst_25 {dimension_numbers = #tpu.dot_dimension_numbers<[1], [0], [0], [1], [0, 0, 1, 1], [], []>} : vector<8x32xf32>, vector<32x128xf32>, vector<8x128xf32> -> vector<8x128xf32>
    %51 = vector.broadcast %49 : vector<8x1xf32> to vector<8x128xf32>
    %52 = vector.broadcast %1 : vector<1x128xf32> to vector<8x128xf32>
    %53 = arith.addf %51, %52 : vector<8x128xf32>
    %cst_26 = arith.constant 2.000000e+00 : f32
    %54 = vector.broadcast %cst_26 : f32 to vector<8x128xf32>
    %55 = arith.mulf %54, %50 : vector<8x128xf32>
    %56 = arith.subf %53, %55 : vector<8x128xf32>
    %cst_27 = arith.constant 0.000000e+00 : f32
    %57 = vector.broadcast %cst_27 : f32 to vector<8x128xf32>
    %58 = arith.maximumf %56, %57 : vector<8x128xf32>
    %cst_28 = arith.constant 1.000000e+00 : f32
    %59 = vector.broadcast %cst_28 : f32 to vector<8x128xf32>
    %60 = arith.addf %59, %58 : vector<8x128xf32>
    %61 = tpu.reciprocal %60 {approx = true} : vector<8x128xf32> -> vector<8x128xf32>
    %cst_29 = arith.constant dense<0.000000e+00> : vector<8xf32>
    %62 = vector.multi_reduction <add>, %61, %cst_29 [1] : vector<8x128xf32> to vector<8xf32>
    %63 = vector.shape_cast %62 : vector<8xf32> to vector<8x1xf32>
    %64 = tpu.reciprocal %63 {approx = true} : vector<8x1xf32> -> vector<8x1xf32>
    %65 = vector.broadcast %64 : vector<8x1xf32> to vector<8x128xf32>
    %66 = arith.mulf %61, %65 : vector<8x128xf32>
    %c0_30 = arith.constant 0 : index
    %c0_31 = arith.constant 0 : index
    %67 = vector.load %arg8[%c0_30, %c0_31] : memref<8x128xf32, #tpu.memory_space<vmem>>, vector<8x128xf32>
    tpu.vector_store %arg8[%c0_30, %c0_31], %66 {strides = array<i32>} : memref<8x128xf32, #tpu.memory_space<vmem>>, vector<8x128xf32>,
    return
  }
  func.func @transform_0(%arg0: i32) -> (i32, i32) {
    %c0_i32 = arith.constant 0 : i32
    %c0_i32_0 = arith.constant 0 : i32
    return %arg0, %c0_i32 : i32, i32
  }
  func.func @transform_1(%arg0: i32) -> (i32, i32) {
    %c0_i32 = arith.constant 0 : i32
    %c0_i32_0 = arith.constant 0 : i32
    return %arg0, %c0_i32 : i32, i32
  }
  func.func @transform_2(%arg0: i32) -> (i32, i32) {
    %c0_i32 = arith.constant 0 : i32
    %c0_i32_0 = arith.constant 0 : i32
    return %arg0, %c0_i32 : i32, i32
  }
  func.func @transform_3(%arg0: i32) -> (i32, i32) {
    %c0_i32 = arith.constant 0 : i32
    %c0_i32_0 = arith.constant 0 : i32
    %c0_i32_1 = arith.constant 0 : i32
    return %c0_i32, %c0_i32_0 : i32, i32
  }
  func.func @transform_4(%arg0: i32) -> (i32, i32) {
    %c0_i32 = arith.constant 0 : i32
    %c0_i32_0 = arith.constant 0 : i32
    %c0_i32_1 = arith.constant 0 : i32
    return %c0_i32, %c0_i32_0 : i32, i32
  }
  func.func @transform_5(%arg0: i32) -> (i32, i32) {
    %c0_i32 = arith.constant 0 : i32
    %c0_i32_0 = arith.constant 0 : i32
    return %arg0, %c0_i32 : i32, i32
  }
  func.func @transform_6(%arg0: i32) -> (i32, i32) {
    %c0_i32 = arith.constant 0 : i32
    %c0_i32_0 = arith.constant 0 : i32
    return %arg0, %c0_i32 : i32, i32
  }
  func.func @transform_7(%arg0: i32) -> (i32, i32) {
    %c0_i32 = arith.constant 0 : i32
    %c0_i32_0 = arith.constant 0 : i32
    return %arg0, %c0_i32 : i32, i32
  }
}

</mosaic_0001>

<llo_original>
// kernel: tpu_custom_call.1
$region0: #{tpu_custom_call.1}
  #allocation0 [shape = 'u32[]', space=smem, size = 0x4, offset = 0x4, fixed_abs, tag = 'smem constant byte address 0x4 - core index']
  #allocation1 [shape = 'u32[144,128]{1,0:T(1,128)}', space=vmem, size = 0x12000, scoped, tag = 'internal scratch']
  %s0 = inlined_call_operand.hbm [shape: f32[16,32], index: 0, kind: input, shape index: {}]
  %s1 = inlined_call_operand.hbm [shape: f32[16,32], index: 1, kind: input, shape index: {}]
  %s2 = inlined_call_operand.hbm [shape: f32[16,32], index: 2, kind: input, shape index: {}]
  %s3 = inlined_call_operand.hbm [shape: f32[32,128], index: 3, kind: input, shape index: {}]
  %s4 = inlined_call_operand.vmem [shape: f32[1,128], index: 4, kind: input, shape index: {}]
  %s5 = inlined_call_operand.hbm [shape: f32[16,128], index: 5, kind: output, shape index: {0}]
  %s6 = inlined_call_operand.hbm [shape: f32[16,128], index: 6, kind: output, shape index: {1}]
  %s7 = inlined_call_operand.hbm [shape: f32[16,128], index: 7, kind: output, shape index: {2}]
  %8 = xla_tuple %s5, %s6, %s7
  %s9 = sld [smem:[#allocation0]]
  $region85: #{tpu_custom_call.1} parent=0
    _
  %s11 = ssub.s32 1, %s9
  %s12 = scalar_select 0, %s11, %s9
  $region1: #{tpu_custom_call.1} parent=0
    #allocation2 [shape = 'u8[8192]{0}', space=vmem, size = 0x2000, scoped, tag = 'input window, operand 0']
    #allocation3 [shape = 's32[2]{0}', space=sflag, size = 0x8, scoped, tag = 'scoped memory for tpu_custom_call.1']
    #allocation4 [shape = 's32[2]{0}', space=sflag, size = 0x8, scoped, tag = 'scoped memory for tpu_custom_call.1']
    #allocation5 [shape = 'u8[8192]{0}', space=vmem, size = 0x2000, scoped, tag = 'input window, operand 1']
    #allocation6 [shape = 's32[2]{0}', space=sflag, size = 0x8, scoped, tag = 'scoped memory for tpu_custom_call.1']
    #allocation7 [shape = 'u8[8192]{0}', space=vmem, size = 0x2000, scoped, tag = 'input window, operand 2']
    #allocation8 [shape = 'u8[16384]{0}', space=vmem, size = 0x4000, scoped, tag = 'input window, operand 3, single buffered']
    #allocation9 [shape = 's32[1]{0}', space=sflag, size = 0x4, scoped, tag = 'scoped memory for tpu_custom_call.1']
    #allocation10 [shape = 'u8[8192]{0}', space=vmem, size = 0x2000, scoped, tag = 'output window, operand 0']
    #allocation11 [shape = 'u8[8192]{0}', space=vmem, size = 0x2000, scoped, tag = 'output window, operand 1']
    #allocation12 [shape = 's32[2]{0}', space=sflag, size = 0x8, scoped, tag = 'scoped memory for tpu_custom_call.1']
    #allocation13 [shape = 'u8[8192]{0}', space=vmem, size = 0x2000, scoped, tag = 'output window, operand 2']
    %13 = vsyncpa [#allocation3], 0
    %s14 = scalar_lea.sflag [#allocation3], 1
    %15 = vsyncpa %s14, 0
    %16 = vsyncpa [#allocation6], 0
    %s17 = scalar_lea.sflag [#allocation6], 1
    %18 = vsyncpa %s17, 0
    %19 = vsyncpa [#allocation9], 0
    %20 = vsyncpa [#allocation4], 0
    %s21 = scalar_lea.sflag [#allocation4], 1
    %22 = vsyncpa %s21, 0
    %23 = vsyncpa [#allocation12], 0
    %s24 = scalar_lea.sflag [#allocation12], 1
    %25 = vsyncpa %s24, 0
    loop: start=0, step=1, limit=4
    $region2: #{tpu_custom_call.1} parent=1 // loop_pre_header
      _
    $region3: #{tpu_custom_call.1} parent=1 // loop_header
      %s27 = sphi 0, %s31
      %p28 = scmp.ge.s32.totalorder %s27, 4
      %s37 = sphi 0, %s39
      %s40 = sphi 0, %s37
      %s41 = sphi 0, %s40
      %s57 = sphi 0, %s41
      %s63 = sphi 0, %s65
      %s66 = sphi 0, %s63
      %s67 = sphi 0, %s66
      %s83 = sphi 0, %s67
      %s89 = sphi 0, %s91
      %s92 = sphi 0, %s89
      %s93 = sphi 0, %s92
      %s109 = sphi 0, %s93
      %s113 = sphi 0, %s113
      %s115 = sphi 0, %s113
      %s116 = sphi 0, %s115
      %s130 = sphi 0, %s116
      %s134 = sphi 0, %s134
      %s136 = sphi 0, %s134
      %s137 = sphi 0, %s136
      %s151 = sphi 0, %s137
      %s157 = sphi 0, %s159
      %s160 = sphi 0, %s157
      %s161 = sphi 0, %s160
      %s177 = sphi 0, %s161
      %s183 = sphi 0, %s185
      %s186 = sphi 0, %s183
      %s187 = sphi 0, %s186
      %s203 = sphi 0, %s187
      %s209 = sphi 0, %s211
      %s212 = sphi 0, %s209
      %s213 = sphi 0, %s212
      %s229 = sphi 0, %s213
    $region4: #{tpu_custom_call.1} parent=1 // loop_header_branch
      %30 = sbr.rel (%p28) target = $region8
    $region5: #{tpu_custom_call.1} parent=1 // loop_body
      %s32 = ssub.s32 %s27, 1
      %s33 = ssub.s32 %s27, 2
      %s34 = sadd.s32 %s27, 1
      %s35 = ssub.s32 %s27, %s34
      %p36 = scmp.eq.s32.totalorder %s35, 0
      %s38 = sadd.s32 %s37, 1
      %s39 = scalar_select %p36, %s37, %s38
      %p42 = pneg %p36
      %p43 = scmp.eq.s32.totalorder %s27, 1
      %p44 = por %p42, %p43
      %p45 = scmp.ne.s32.totalorder %s37, %s40
      %p46 = scmp.eq.s32.totalorder %s27, 0
      %p47 = por %p45, %p46
      %p48 = scmp.ne.s32.totalorder %s37, %s40
      %p49 = scmp.eq.s32.totalorder %s32, 1
      %p50 = por %p48, %p49
      %p51 = scmp.ne.s32.totalorder %s40, %s41
      %p52 = scmp.eq.s32.totalorder %s32, 0
      %p53 = por %p51, %p52
      %p54 = scmp.ne.s32.totalorder %s40, %s41
      %p55 = scmp.eq.s32.totalorder %s33, 1
      %p56 = por %p54, %p55
      %p58 = scmp.ne.s32.totalorder %s41, %s57
      %p59 = scmp.eq.s32.totalorder %s33, 0
      %p60 = por %p58, %p59
      %s61 = ssub.s32 %s27, %s34
      %p62 = scmp.eq.s32.totalorder %s61, 0
      %s64 = sadd.s32 %s63, 1
      %s65 = scalar_select %p62, %s63, %s64
      %p68 = pneg %p62
      %p69 = scmp.eq.s32.totalorder %s27, 1
      %p70 = por %p68, %p69
      %p71 = scmp.ne.s32.totalorder %s63, %s66
      %p72 = scmp.eq.s32.totalorder %s27, 0
      %p73 = por %p71, %p72
      %p74 = scmp.ne.s32.totalorder %s63, %s66
      %p75 = scmp.eq.s32.totalorder %s32, 1
      %p76 = por %p74, %p75
      %p77 = scmp.ne.s32.totalorder %s66, %s67
      %p78 = scmp.eq.s32.totalorder %s32, 0
      %p79 = por %p77, %p78
      %p80 = scmp.ne.s32.totalorder %s66, %s67
      %p81 = scmp.eq.s32.totalorder %s33, 1
      %p82 = por %p80, %p81
      %p84 = scmp.ne.s32.totalorder %s67, %s83
      %p85 = scmp.eq.s32.totalorder %s33, 0
      %p86 = por %p84, %p85
      %s87 = ssub.s32 %s27, %s34
      %p88 = scmp.eq.s32.totalorder %s87, 0
      %s90 = sadd.s32 %s89, 1
      %s91 = scalar_select %p88, %s89, %s90
      %p94 = pneg %p88
      %p95 = scmp.eq.s32.totalorder %s27, 1
      %p96 = por %p94, %p95
      %p97 = scmp.ne.s32.totalorder %s89, %s92
      %p98 = scmp.eq.s32.totalorder %s27, 0
      %p99 = por %p97, %p98
      %p100 = scmp.ne.s32.totalorder %s89, %s92
      %p101 = scmp.eq.s32.totalorder %s32, 1
      %p102 = por %p100, %p101
      %p103 = scmp.ne.s32.totalorder %s92, %s93
      %p104 = scmp.eq.s32.totalorder %s32, 0
      %p105 = por %p103, %p104
      %p106 = scmp.ne.s32.totalorder %s92, %s93
      %p107 = scmp.eq.s32.totalorder %s33, 1
      %p108 = por %p106, %p107
      %p110 = scmp.ne.s32.totalorder %s93, %s109
      %p111 = scmp.eq.s32.totalorder %s33, 0
      %p112 = por %p110, %p111
      %s114 = sadd.s32 %s113, 1
      %p117 = scmp.eq.s32.totalorder %s27, 1
      %p118 = scmp.ne.s32.totalorder %s113, %s115
      %p119 = scmp.eq.s32.totalorder %s27, 0
      %p120 = por %p118, %p119
      %p121 = scmp.ne.s32.totalorder %s113, %s115
      %p122 = scmp.eq.s32.totalorder %s32, 1
      %p123 = por %p121, %p122
      %p124 = scmp.ne.s32.totalorder %s115, %s116
      %p125 = scmp.eq.s32.totalorder %s32, 0
      %p126 = por %p124, %p125
      %p127 = scmp.ne.s32.totalorder %s115, %s116
      %p128 = scmp.eq.s32.totalorder %s33, 1
      %p129 = por %p127, %p128
      %p131 = scmp.ne.s32.totalorder %s116, %s130
      %p132 = scmp.eq.s32.totalorder %s33, 0
      %p133 = por %p131, %p132
      %s135 = sadd.s32 %s134, 1
      %p138 = scmp.eq.s32.totalorder %s27, 1
      %p139 = scmp.ne.s32.totalorder %s134, %s136
      %p140 = scmp.eq.s32.totalorder %s27, 0
      %p141 = por %p139, %p140
      %p142 = scmp.ne.s32.totalorder %s134, %s136
      %p143 = scmp.eq.s32.totalorder %s32, 1
      %p144 = por %p142, %p143
      %p145 = scmp.ne.s32.totalorder %s136, %s137
      %p146 = scmp.eq.s32.totalorder %s32, 0
      %p147 = por %p145, %p146
      %p148 = scmp.ne.s32.totalorder %s136, %s137
      %p149 = scmp.eq.s32.totalorder %s33, 1
      %p150 = por %p148, %p149
      %p152 = scmp.ne.s32.totalorder %s137, %s151
      %p153 = scmp.eq.s32.totalorder %s33, 0
      %p154 = por %p152, %p153
      %s155 = ssub.s32 %s27, %s34
      %p156 = scmp.eq.s32.totalorder %s155, 0
      %s158 = sadd.s32 %s157, 1
      %s159 = scalar_select %p156, %s157, %s158
      %p162 = pneg %p156
      %p163 = scmp.eq.s32.totalorder %s27, 1
      %p164 = por %p162, %p163
      %p165 = scmp.ne.s32.totalorder %s157, %s160
      %p166 = scmp.eq.s32.totalorder %s27, 0
      %p167 = por %p165, %p166
      %p168 = scmp.ne.s32.totalorder %s157, %s160
      %p169 = scmp.eq.s32.totalorder %s32, 1
      %p170 = por %p168, %p169
      %p171 = scmp.ne.s32.totalorder %s160, %s161
      %p172 = scmp.eq.s32.totalorder %s32, 0
      %p173 = por %p171, %p172
      %p174 = scmp.ne.s32.totalorder %s160, %s161
      %p175 = scmp.eq.s32.totalorder %s33, 1
      %p176 = por %p174, %p175
      %p178 = scmp.ne.s32.totalorder %s161, %s177
      %p179 = scmp.eq.s32.totalorder %s33, 0
      %p180 = por %p178, %p179
      %s181 = ssub.s32 %s27, %s34
      %p182 = scmp.eq.s32.totalorder %s181, 0
      %s184 = sadd.s32 %s183, 1
      %s185 = scalar_select %p182, %s183, %s184
      %p188 = pneg %p182
      %p189 = scmp.eq.s32.totalorder %s27, 1
      %p190 = por %p188, %p189
      %p191 = scmp.ne.s32.totalorder %s183, %s186
      %p192 = scmp.eq.s32.totalorder %s27, 0
      %p193 = por %p191, %p192
      %p194 = scmp.ne.s32.totalorder %s183, %s186
      %p195 = scmp.eq.s32.totalorder %s32, 1
      %p196 = por %p194, %p195
      %p197 = scmp.ne.s32.totalorder %s186, %s187
      %p198 = scmp.eq.s32.totalorder %s32, 0
      %p199 = por %p197, %p198
      %p200 = scmp.ne.s32.totalorder %s186, %s187
      %p201 = scmp.eq.s32.totalorder %s33, 1
      %p202 = por %p200, %p201
      %p204 = scmp.ne.s32.totalorder %s187, %s203
      %p205 = scmp.eq.s32.totalorder %s33, 0
      %p206 = por %p204, %p205
      %s207 = ssub.s32 %s27, %s34
      %p208 = scmp.eq.s32.totalorder %s207, 0
      %s210 = sadd.s32 %s209, 1
      %s211 = scalar_select %p208, %s209, %s210
      %p214 = pneg %p208
      %p215 = scmp.eq.s32.totalorder %s27, 1
      %p216 = por %p214, %p215
      %p217 = scmp.ne.s32.totalorder %s209, %s212
      %p218 = scmp.eq.s32.totalorder %s27, 0
      %p219 = por %p217, %p218
      %p220 = scmp.ne.s32.totalorder %s209, %s212
      %p221 = scmp.eq.s32.totalorder %s32, 1
      %p222 = por %p220, %p221
      %p223 = scmp.ne.s32.totalorder %s212, %s213
      %p224 = scmp.eq.s32.totalorder %s32, 0
      %p225 = por %p223, %p224
      %p226 = scmp.ne.s32.totalorder %s212, %s213
      %p227 = scmp.eq.s32.totalorder %s33, 1
      %p228 = por %p226, %p227
      %p230 = scmp.ne.s32.totalorder %s213, %s229
      %p231 = scmp.eq.s32.totalorder %s33, 0
      %p232 = por %p230, %p231
      %p233 = scmp.le.s32.totalorder 1, %s27
      %p234 = scmp.lt.s32.totalorder %s27, 3
      %p235 = pnand %p233, %p234
      %p236 = pneg %p235
      // Predicated region
      $region9: #{tpu_custom_call.1} parent=5 // pred_check
        _
      $region10: #{tpu_custom_call.1} parent=5 // pred_check_branch
        %238 = sbr.rel (%p235) target = $region12
      $region11: #{tpu_custom_call.1} parent=5 // pred_region
        %s239 = ssub.s32 %s27, 1
        // Predicated region
        $region13: #{tpu_custom_call.1} parent=11 // pred_check
          %p240 = pneg %p126
        $region14: #{tpu_custom_call.1} parent=11 // pred_check_branch
          %242 = sbr.rel (%p240) target = $region16
        $region15: #{tpu_custom_call.1} parent=11 // pred_region
          %s244 = ssub.s32 512, 512
          %245 = vsyncadd [#allocation9], %s244
          %s246 = sshll.u32 [#allocation8], 4
          %s247 = int_to_ptr.vmem [resolvable:$true] %s246
          %252 = dma.hbm_to_vmem [thread:$0]  %s3, 512, %s247, [#allocation9], 128, 128, 8
        $region16: #{tpu_custom_call.1} parent=11 // pred_fallthru
          _
        // Predicated region
        $region17: #{tpu_custom_call.1} parent=11 // pred_check
          %p253 = pneg %p147
        $region18: #{tpu_custom_call.1} parent=11 // pred_check_branch
          %255 = sbr.rel (%p253) target = $region20
        $region19: #{tpu_custom_call.1} parent=11 // pred_region
          _
        $region20: #{tpu_custom_call.1} parent=11 // pred_fallthru
          _
      $region12: #{tpu_custom_call.1} parent=5 // pred_fallthru
        _
      %p256 = scmp.lt.s32.totalorder %s27, 2
      // Predicated region
      $region21: #{tpu_custom_call.1} parent=5 // pred_check
        %p257 = pneg %p256
      $region22: #{tpu_custom_call.1} parent=5 // pred_check_branch
        %259 = sbr.rel (%p257) target = $region24
      $region23: #{tpu_custom_call.1} parent=5 // pred_region
        // Predicated region
        $region25: #{tpu_custom_call.1} parent=23 // pred_check
          %p260 = pneg %p47
        $region26: #{tpu_custom_call.1} parent=23 // pred_check_branch
          %262 = sbr.rel (%p260) target = $region28
        $region27: #{tpu_custom_call.1} parent=23 // pred_region
          %s263 = sand.u32 %s37, 1
          %s264 = scalar_lea.sflag [#allocation3], %s263
          %s265 = sand.u32 %s37, 1
          %s266 = smul.addr %s265, 8
          %s267 = scalar_lea.vmem [#allocation2], %s266
          %s269 = ssub.s32 128, 128
          %270 = vsyncadd %s264, %s269
          %s271 = smul.addr %s27, 128
          %s272 = scalar_lea.hbm %s0, %s271
          %s274 = sshll.u32 %s267, 4
          %s275 = int_to_ptr.vmem [resolvable:$true] %s274
          %277 = dma.hbm_to_vmem [thread:$0]  %s272, 128, %s275, %s264
        $region28: #{tpu_custom_call.1} parent=23 // pred_fallthru
          _
        // Predicated region
        $region29: #{tpu_custom_call.1} parent=23 // pred_check
          %p278 = pneg %p73
        $region30: #{tpu_custom_call.1} parent=23 // pred_check_branch
          %280 = sbr.rel (%p278) target = $region32
        $region31: #{tpu_custom_call.1} parent=23 // pred_region
          %s281 = sand.u32 %s27, 1
          %s282 = scalar_lea.sflag [#allocation6], %s281
          %s283 = sand.u32 %s63, 1
          %s284 = smul.addr %s283, 8
          %s285 = scalar_lea.vmem [#allocation5], %s284
          %s287 = ssub.s32 128, 128
          %288 = vsyncadd %s282, %s287
          %s289 = smul.addr %s27, 128
          %s290 = scalar_lea.hbm %s1, %s289
          %s292 = sshll.u32 %s285, 4
          %s293 = int_to_ptr.vmem [resolvable:$true] %s292
          %295 = dma.hbm_to_vmem [thread:$0]  %s290, 128, %s293, %s282
        $region32: #{tpu_custom_call.1} parent=23 // pred_fallthru
          _
        // Predicated region
        $region33: #{tpu_custom_call.1} parent=23 // pred_check
          %p296 = pneg %p99
        $region34: #{tpu_custom_call.1} parent=23 // pred_check_branch
          %298 = sbr.rel (%p296) target = $region36
        $region35: #{tpu_custom_call.1} parent=23 // pred_region
          %s299 = sand.u32 %s27, 1
          %s300 = scalar_lea.sflag [#allocation6], %s299
          %s301 = sand.u32 %s89, 1
          %s302 = smul.addr %s301, 8
          %s303 = scalar_lea.vmem [#allocation7], %s302
          %s305 = ssub.s32 128, 128
          %306 = vsyncadd %s300, %s305
          %s307 = smul.addr %s27, 128
          %s308 = scalar_lea.hbm %s2, %s307
          %s310 = sshll.u32 %s303, 4
          %s311 = int_to_ptr.vmem [resolvable:$true] %s310
          %313 = dma.hbm_to_vmem [thread:$0]  %s308, 128, %s311, %s300
        $region36: #{tpu_custom_call.1} parent=23 // pred_fallthru
          _
      $region24: #{tpu_custom_call.1} parent=5 // pred_fallthru
        _
      %p314 = scmp.le.s32.totalorder 1, %s27
      %p315 = scmp.lt.s32.totalorder %s27, 3
      %p316 = pnand %p314, %p315
      %p317 = pneg %p316
      // Predicated region
      $region37: #{tpu_custom_call.1} parent=5 // pred_check
        _
      $region38: #{tpu_custom_call.1} parent=5 // pred_check_branch
        %319 = sbr.rel (%p316) target = $region40
      $region39: #{tpu_custom_call.1} parent=5 // pred_region
        %s320 = ssub.s32 %s27, 1
        %s321 = sand.u32 %s40, 1
        %s322 = scalar_lea.sflag [#allocation3], %s321
        %s323 = sand.u32 %s40, 1
        %s324 = smul.addr %s323, 8
        %s325 = scalar_lea.vmem [#allocation2], %s324
        // Predicated region
        $region41: #{tpu_custom_call.1} parent=39 // pred_check
          %p326 = pneg %p53
        $region42: #{tpu_custom_call.1} parent=39 // pred_check_branch
          %328 = sbr.rel (%p326) target = $region44
        $region43: #{tpu_custom_call.1} parent=39 // pred_region
          %329 = dma.done %s322, 128
        $region44: #{tpu_custom_call.1} parent=39 // pred_fallthru
          _
        %s330 = sand.u32 %s32, 1
        %s331 = scalar_lea.sflag [#allocation6], %s330
        %s332 = sand.u32 %s66, 1
        %s333 = smul.addr %s332, 8
        %s334 = scalar_lea.vmem [#allocation5], %s333
        // Predicated region
        $region45: #{tpu_custom_call.1} parent=39 // pred_check
          %p335 = pneg %p79
        $region46: #{tpu_custom_call.1} parent=39 // pred_check_branch
          %337 = sbr.rel (%p335) target = $region48
        $region47: #{tpu_custom_call.1} parent=39 // pred_region
          %338 = dma.done %s331, 128
        $region48: #{tpu_custom_call.1} parent=39 // pred_fallthru
          _
        %s339 = sand.u32 %s32, 1
        %s340 = scalar_lea.sflag [#allocation6], %s339
        %s341 = sand.u32 %s92, 1
        %s342 = smul.addr %s341, 8
        %s343 = scalar_lea.vmem [#allocation7], %s342
        // Predicated region
        $region49: #{tpu_custom_call.1} parent=39 // pred_check
          %p344 = pneg %p105
        $region50: #{tpu_custom_call.1} parent=39 // pred_check_branch
          %346 = sbr.rel (%p344) target = $region52
        $region51: #{tpu_custom_call.1} parent=39 // pred_region
          %347 = dma.done %s340, 128
        $region52: #{tpu_custom_call.1} parent=39 // pred_fallthru
          _
        // Predicated region
        $region53: #{tpu_custom_call.1} parent=39 // pred_check
          %p348 = pneg %p126
        $region54: #{tpu_custom_call.1} parent=39 // pred_check_branch
          %350 = sbr.rel (%p348) target = $region56
        $region55: #{tpu_custom_call.1} parent=39 // pred_region
          %351 = dma.done [#allocation9], 512
        $region56: #{tpu_custom_call.1} parent=39 // pred_fallthru
          _
        %s352 = sand.u32 %s40, 1
        %s353 = scalar_lea.sflag [#allocation3], %s352
        %s354 = sand.u32 %s40, 1
        %s355 = smul.addr %s354, 8
        %s356 = scalar_lea.vmem [#allocation2], %s355
        %p357 = pneg %p53
        %p358 = pneg %p50
        %s359 = sand.u32 %s32, 1
        %s360 = scalar_lea.sflag [#allocation6], %s359
        %s361 = sand.u32 %s66, 1
        %s362 = smul.addr %s361, 8
        %s363 = scalar_lea.vmem [#allocation5], %s362
        %p364 = pneg %p79
        %p365 = pneg %p76
        %s366 = sand.u32 %s32, 1
        %s367 = scalar_lea.sflag [#allocation6], %s366
        %s368 = sand.u32 %s92, 1
        %s369 = smul.addr %s368, 8
        %s370 = scalar_lea.vmem [#allocation7], %s369
        %p371 = pneg %p105
        %p372 = pneg %p102
        %p373 = pneg %p126
        %p374 = pneg %p123
        %p375 = pneg %p147
        %p376 = pneg %p144
        %p377 = pneg %p173
        %p378 = pneg %p170
        %s379 = sand.u32 %s160, 1
        %s380 = scalar_lea.sflag [#allocation4], %s379
        %s381 = sand.u32 %s160, 1
        %s382 = smul.addr %s381, 8
        %s383 = scalar_lea.vmem [#allocation10], %s382
        %p384 = pneg %p199
        %p385 = pneg %p196
        %s386 = sand.u32 %s32, 1
        %s387 = scalar_lea.sflag [#allocation12], %s386
        %s388 = sand.u32 %s186, 1
        %s389 = smul.addr %s388, 8
        %s390 = scalar_lea.vmem [#allocation11], %s389
        %p391 = pneg %p225
        %p392 = pneg %p222
        %s393 = sand.u32 %s32, 1
        %s394 = scalar_lea.sflag [#allocation12], %s393
        %s395 = sand.u32 %s212, 1
        %s396 = smul.addr %s395, 8
        %s397 = scalar_lea.vmem [#allocation13], %s396
        %v398 = vld [vmem:[#allocation8] sm:$0xff]
        %v399 = vld [vmem:[#allocation8 + $0x8] sm:$0xff]
        %v400 = vld [vmem:[#allocation8 + $0x10] sm:$0xff]
        %v401 = vld [vmem:[#allocation8 + $0x18] sm:$0xff]
        %v402 = vld [vmem:[%s4] sm:$0x1]
        %v403 = vld [vmem:[%s325] sm:$0xff]
        %v404 = vmul.f32 %v403, %v403
        %vm405 = vcmask 261120
        %v406 = vsel %vm405, %v404, 0.0
        %407 = vadd.xlane.f32.xlu0 %v406
        %v408 = vpop.xlane.xlu0 %407
        %v410 = vsel %vm405, %v403, 0
        %412 = vmatprep.subr.mxu0 0.0
        %413 = vmatpush1.msra.mxu0 %v398
        %414 = vmatprep.subr.mxu0 0.0
        %415 = vmatpush1.msra.mxu0 %v399
        %416 = vmatprep.subr.mxu0 0.0
        %417 = vmatpush1.msra.mxu0 %v400
        %418 = vmatprep.subr.mxu0 0.0
        %419 = vmatpush1.msra.mxu0 %v401
        %420 = vmatprep.subr.mxu0 0.0
        %421 = vmatpush1.msra.mxu0 0.0
        %422 = vmatprep.subr.mxu0 0.0
        %423 = vmatpush1.msra.mxu0 0.0
        %424 = vmatprep.subr.mxu0 0.0
        %425 = vmatpush1.msra.mxu0 0.0
        %426 = vmatprep.subr.mxu0 0.0
        %427 = vmatpush1.msra.mxu0 0.0
        %428 = vmatprep.subr.mxu0 0.0
        %429 = vmatpush1.msra.mxu0 0.0
        %430 = vmatprep.subr.mxu0 0.0
        %431 = vmatpush1.msra.mxu0 0.0
        %432 = vmatprep.subr.mxu0 0.0
        %433 = vmatpush1.msra.mxu0 0.0
        %434 = vmatprep.subr.mxu0 0.0
        %435 = vmatpush1.msra.mxu0 0.0
        %436 = vmatprep.subr.mxu0 0.0
        %437 = vmatpush1.msra.mxu0 0.0
        %438 = vmatprep.subr.mxu0 0.0
        %439 = vmatpush1.msra.mxu0 0.0
        %440 = vmatprep.subr.mxu0 0.0
        %441 = vmatpush1.msra.mxu0 0.0
        %442 = vmatprep.subr.mxu0 0.0
        %443 = vmatpush1.msra.mxu0 0.0
        %444 = vmatprep.subr.mxu0 0.0
        %445 = vmatpush1.msra.mxu0 0.0
        %446 = vmatprep.subr.mxu0 0.0
        %447 = vmatpush1.msra.mxu0 0.0
        %448 = vmatprep.subr.mxu0 0.0
        %449 = vmatpush1.msra.mxu0 0.0
        %450 = vmatprep.subr.mxu0 0.0
        %451 = vmatpush1.msra.mxu0 0.0
        %452 = vmatprep.subr.mxu0 0.0
        %453 = vmatpush1.msra.mxu0 0.0
        %454 = vmatprep.subr.mxu0 0.0
        %455 = vmatpush1.msra.mxu0 0.0
        %456 = vmatprep.subr.mxu0 0.0
        %457 = vmatpush1.msra.mxu0 0.0
        %458 = vmatprep.subr.mxu0 0.0
        %459 = vmatpush1.msra.mxu0 0.0
        %460 = vmatprep.subr.mxu0 0.0
        %461 = vmatpush1.msra.mxu0 0.0
        %462 = vmatprep.subr.mxu0 0.0
        %463 = vmatpush1.msra.mxu0 0.0
        %464 = vmatprep.subr.mxu0 0.0
        %465 = vmatpush1.msra.mxu0 0.0
        %466 = vmatprep.subr.mxu0 0.0
        %467 = vmatpush1.msra.mxu0 0.0
        %468 = vmatprep.subr.mxu0 0.0
        %469 = vmatpush1.msra.mxu0 0.0
        %470 = vmatprep.subr.mxu0 0.0
        %471 = vmatpush1.msra.mxu0 0.0
        %472 = vmatprep.subr.mxu0 0.0
        %473 = vmatpush1.msra.mxu0 0.0
        %474 = vmatprep.subr.mxu0 0.0
        %475 = vmatpush1.msra.mxu0 0.0
        %476 = vmatprep.mubr.f32.mxu0 0.0
        %477 = vmatmul.mubr.f32.gmra.mrb[0].mxu0 %v410
        %v478 = vpop.f32.mrb[0].mxu0
        %v479 = vadd.f32 0.0, %v478
        %v480 = vpop.f32.mrb[0].mxu0
        %481 = vdwg.mxu0
        %v483 = vlaneseq
        %v484 = vshrl.u32 %v483, 7
        %v485 = vsub.s32 0, %v484
        %v486 = vrot.slane %v402, %v485
        %v488 = vadd.f32 %v408, %v486
        %v489 = vmul.f32 %v479, 2.0
        %v490 = vsub.f32 %v488, %v489
        %v491 = vmax.f32 %v490, 0.0
        %v492 = vadd.f32 %v491, 1.0
        %v493 = vrcp.pop %v492
        %494 = vadd.xlane.f32.xlu0 %v493
        %v495 = vpop.xlane.xlu0 %494
        %v496 = vrcp.pop %v495
        %v497 = vmul.f32 %v493, %v496
        %498 = vst [vmem:[%s383] sm:$0xff] %v497
        %v499 = vld [vmem:[%s334] sm:$0xff]
        %v500 = vmul.f32 %v499, %v499
        %v501 = vsel %vm405, %v500, 0.0
        %502 = vadd.xlane.f32.xlu0 %v501
        %v503 = vpop.xlane.xlu0 %502
        %v505 = vsel %vm405, %v499, 0
        %507 = vmatprep.subr.mxu0 0.0
        %508 = vmatpush1.msra.mxu0 %v398
        %509 = vmatprep.subr.mxu0 0.0
        %510 = vmatpush1.msra.mxu0 %v399
        %511 = vmatprep.subr.mxu0 0.0
        %512 = vmatpush1.msra.mxu0 %v400
        %513 = vmatprep.subr.mxu0 0.0
        %514 = vmatpush1.msra.mxu0 %v401
        %515 = vmatprep.subr.mxu0 0.0
        %516 = vmatpush1.msra.mxu0 0.0
        %517 = vmatprep.subr.mxu0 0.0
        %518 = vmatpush1.msra.mxu0 0.0
        %519 = vmatprep.subr.mxu0 0.0
        %520 = vmatpush1.msra.mxu0 0.0
        %521 = vmatprep.subr.mxu0 0.0
        %522 = vmatpush1.msra.mxu0 0.0
        %523 = vmatprep.subr.mxu0 0.0
        %524 = vmatpush1.msra.mxu0 0.0
        %525 = vmatprep.subr.mxu0 0.0
        %526 = vmatpush1.msra.mxu0 0.0
        %527 = vmatprep.subr.mxu0 0.0
        %528 = vmatpush1.msra.mxu0 0.0
        %529 = vmatprep.subr.mxu0 0.0
        %530 = vmatpush1.msra.mxu0 0.0
        %531 = vmatprep.subr.mxu0 0.0
        %532 = vmatpush1.msra.mxu0 0.0
        %533 = vmatprep.subr.mxu0 0.0
        %534 = vmatpush1.msra.mxu0 0.0
        %535 = vmatprep.subr.mxu0 0.0
        %536 = vmatpush1.msra.mxu0 0.0
        %537 = vmatprep.subr.mxu0 0.0
        %538 = vmatpush1.msra.mxu0 0.0
        %539 = vmatprep.subr.mxu0 0.0
        %540 = vmatpush1.msra.mxu0 0.0
        %541 = vmatprep.subr.mxu0 0.0
        %542 = vmatpush1.msra.mxu0 0.0
        %543 = vmatprep.subr.mxu0 0.0
        %544 = vmatpush1.msra.mxu0 0.0
        %545 = vmatprep.subr.mxu0 0.0
        %546 = vmatpush1.msra.mxu0 0.0
        %547 = vmatprep.subr.mxu0 0.0
        %548 = vmatpush1.msra.mxu0 0.0
        %549 = vmatprep.subr.mxu0 0.0
        %550 = vmatpush1.msra.mxu0 0.0
        %551 = vmatprep.subr.mxu0 0.0
        %552 = vmatpush1.msra.mxu0 0.0
        %553 = vmatprep.subr.mxu0 0.0
        %554 = vmatpush1.msra.mxu0 0.0
        %555 = vmatprep.subr.mxu0 0.0
        %556 = vmatpush1.msra.mxu0 0.0
        %557 = vmatprep.subr.mxu0 0.0
        %558 = vmatpush1.msra.mxu0 0.0
        %559 = vmatprep.subr.mxu0 0.0
        %560 = vmatpush1.msra.mxu0 0.0
        %561 = vmatprep.subr.mxu0 0.0
        %562 = vmatpush1.msra.mxu0 0.0
        %563 = vmatprep.subr.mxu0 0.0
        %564 = vmatpush1.msra.mxu0 0.0
        %565 = vmatprep.subr.mxu0 0.0
        %566 = vmatpush1.msra.mxu0 0.0
        %567 = vmatprep.subr.mxu0 0.0
        %568 = vmatpush1.msra.mxu0 0.0
        %569 = vmatprep.subr.mxu0 0.0
        %570 = vmatpush1.msra.mxu0 0.0
        %571 = vmatprep.mubr.f32.mxu0 0.0
        %572 = vmatmul.mubr.f32.gmra.mrb[0].mxu0 %v505
        %v573 = vpop.f32.mrb[0].mxu0
        %v574 = vadd.f32 0.0, %v573
        %v575 = vpop.f32.mrb[0].mxu0
        %576 = vdwg.mxu0
        %v577 = vadd.f32 %v503, %v486
        %v578 = vmul.f32 %v574, 2.0
        %v579 = vsub.f32 %v577, %v578
        %v580 = vmax.f32 %v579, 0.0
        %v581 = vadd.f32 %v580, 1.0
        %v582 = vrcp.pop %v581
        %583 = vadd.xlane.f32.xlu0 %v582
        %v584 = vpop.xlane.xlu0 %583
        %v585 = vrcp.pop %v584
        %v586 = vmul.f32 %v582, %v585
        %587 = vst [vmem:[%s390] sm:$0xff] %v586
        %v588 = vld [vmem:[%s343] sm:$0xff]
        %v589 = vmul.f32 %v588, %v588
        %v590 = vsel %vm405, %v589, 0.0
        %591 = vadd.xlane.f32.xlu0 %v590
        %v592 = vpop.xlane.xlu0 %591
        %v594 = vsel %vm405, %v588, 0
        %596 = vmatprep.subr.mxu0 0.0
        %597 = vmatpush1.msra.mxu0 %v398
        %598 = vmatprep.subr.mxu0 0.0
        %599 = vmatpush1.msra.mxu0 %v399
        %600 = vmatprep.subr.mxu0 0.0
        %601 = vmatpush1.msra.mxu0 %v400
        %602 = vmatprep.subr.mxu0 0.0
        %603 = vmatpush1.msra.mxu0 %v401
        %604 = vmatprep.subr.mxu0 0.0
        %605 = vmatpush1.msra.mxu0 0.0
        %606 = vmatprep.subr.mxu0 0.0
        %607 = vmatpush1.msra.mxu0 0.0
        %608 = vmatprep.subr.mxu0 0.0
        %609 = vmatpush1.msra.mxu0 0.0
        %610 = vmatprep.subr.mxu0 0.0
        %611 = vmatpush1.msra.mxu0 0.0
        %612 = vmatprep.subr.mxu0 0.0
        %613 = vmatpush1.msra.mxu0 0.0
        %614 = vmatprep.subr.mxu0 0.0
        %615 = vmatpush1.msra.mxu0 0.0
        %616 = vmatprep.subr.mxu0 0.0
        %617 = vmatpush1.msra.mxu0 0.0
        %618 = vmatprep.subr.mxu0 0.0
        %619 = vmatpush1.msra.mxu0 0.0
        %620 = vmatprep.subr.mxu0 0.0
        %621 = vmatpush1.msra.mxu0 0.0
        %622 = vmatprep.subr.mxu0 0.0
        %623 = vmatpush1.msra.mxu0 0.0
        %624 = vmatprep.subr.mxu0 0.0
        %625 = vmatpush1.msra.mxu0 0.0
        %626 = vmatprep.subr.mxu0 0.0
        %627 = vmatpush1.msra.mxu0 0.0
        %628 = vmatprep.subr.mxu0 0.0
        %629 = vmatpush1.msra.mxu0 0.0
        %630 = vmatprep.subr.mxu0 0.0
        %631 = vmatpush1.msra.mxu0 0.0
        %632 = vmatprep.subr.mxu0 0.0
        %633 = vmatpush1.msra.mxu0 0.0
        %634 = vmatprep.subr.mxu0 0.0
        %635 = vmatpush1.msra.mxu0 0.0
        %636 = vmatprep.subr.mxu0 0.0
        %637 = vmatpush1.msra.mxu0 0.0
        %638 = vmatprep.subr.mxu0 0.0
        %639 = vmatpush1.msra.mxu0 0.0
        %640 = vmatprep.subr.mxu0 0.0
        %641 = vmatpush1.msra.mxu0 0.0
        %642 = vmatprep.subr.mxu0 0.0
        %643 = vmatpush1.msra.mxu0 0.0
        %644 = vmatprep.subr.mxu0 0.0
        %645 = vmatpush1.msra.mxu0 0.0
        %646 = vmatprep.subr.mxu0 0.0
        %647 = vmatpush1.msra.mxu0 0.0
        %648 = vmatprep.subr.mxu0 0.0
        %649 = vmatpush1.msra.mxu0 0.0
        %650 = vmatprep.subr.mxu0 0.0
        %651 = vmatpush1.msra.mxu0 0.0
        %652 = vmatprep.subr.mxu0 0.0
        %653 = vmatpush1.msra.mxu0 0.0
        %654 = vmatprep.subr.mxu0 0.0
        %655 = vmatpush1.msra.mxu0 0.0
        %656 = vmatprep.subr.mxu0 0.0
        %657 = vmatpush1.msra.mxu0 0.0
        %658 = vmatprep.subr.mxu0 0.0
        %659 = vmatpush1.msra.mxu0 0.0
        %660 = vmatprep.mubr.f32.mxu0 0.0
        %661 = vmatmul.mubr.f32.gmra.mrb[0].mxu0 %v594
        %v662 = vpop.f32.mrb[0].mxu0
        %v663 = vadd.f32 0.0, %v662
        %v664 = vpop.f32.mrb[0].mxu0
        %665 = vdwg.mxu0
        %v666 = vadd.f32 %v592, %v486
        %v667 = vmul.f32 %v663, 2.0
        %v668 = vsub.f32 %v666, %v667
        %v669 = vmax.f32 %v668, 0.0
        %v670 = vadd.f32 %v669, 1.0
        %v671 = vrcp.pop %v670
        %672 = vadd.xlane.f32.xlu0 %v671
        %v673 = vpop.xlane.xlu0 %672
        %v674 = vrcp.pop %v673
        %v675 = vmul.f32 %v671, %v674
        %676 = vst [vmem:[%s397] sm:$0xff] %v675
        %s677 = sand.u32 %s160, 1
        %s678 = scalar_lea.sflag [#allocation4], %s677
        %s679 = sand.u32 %s160, 1
        %s680 = smul.addr %s679, 8
        %s681 = scalar_lea.vmem [#allocation10], %s680
        %s682 = sand.u32 %s32, 1
        %s683 = scalar_lea.sflag [#allocation12], %s682
        %s684 = sand.u32 %s186, 1
        %s685 = smul.addr %s684, 8
        %s686 = scalar_lea.vmem [#allocation11], %s685
        %s687 = sand.u32 %s32, 1
        %s688 = scalar_lea.sflag [#allocation12], %s687
        %s689 = sand.u32 %s212, 1
        %s690 = smul.addr %s689, 8
        %s691 = scalar_lea.vmem [#allocation13], %s690
        // Predicated region
        $region57: #{tpu_custom_call.1} parent=39 // pred_check
          %p692 = pneg %p170
        $region58: #{tpu_custom_call.1} parent=39 // pred_check_branch
          %694 = sbr.rel (%p692) target = $region60
        $region59: #{tpu_custom_call.1} parent=39 // pred_region
          %s696 = ssub.s32 128, 128
          %697 = vsyncadd %s678, %s696
          %s698 = smul.addr %s32, 128
          %s699 = scalar_lea.hbm %s5, %s698
          %s701 = sshll.u32 %s681, 4
          %s702 = int_to_ptr.vmem [resolvable:$true] %s701
          %704 = dma.vmem_to_hbm [thread:$0]  %s702, 128, %s699, %s678
        $region60: #{tpu_custom_call.1} parent=39 // pred_fallthru
          _
        // Predicated region
        $region61: #{tpu_custom_call.1} parent=39 // pred_check
          %p705 = pneg %p196
        $region62: #{tpu_custom_call.1} parent=39 // pred_check_branch
          %707 = sbr.rel (%p705) target = $region64
        $region63: #{tpu_custom_call.1} parent=39 // pred_region
          %s709 = ssub.s32 128, 128
          %710 = vsyncadd %s683, %s709
          %s711 = smul.addr %s32, 128
          %s712 = scalar_lea.hbm %s6, %s711
          %s714 = sshll.u32 %s686, 4
          %s715 = int_to_ptr.vmem [resolvable:$true] %s714
          %717 = dma.vmem_to_hbm [thread:$0]  %s715, 128, %s712, %s683
        $region64: #{tpu_custom_call.1} parent=39 // pred_fallthru
          _
        // Predicated region
        $region65: #{tpu_custom_call.1} parent=39 // pred_check
          %p718 = pneg %p222
        $region66: #{tpu_custom_call.1} parent=39 // pred_check_branch
          %720 = sbr.rel (%p718) target = $region68
        $region67: #{tpu_custom_call.1} parent=39 // pred_region
          %s722 = ssub.s32 128, 128
          %723 = vsyncadd %s688, %s722
          %s724 = smul.addr %s32, 128
          %s725 = scalar_lea.hbm %s7, %s724
          %s727 = sshll.u32 %s691, 4
          %s728 = int_to_ptr.vmem [resolvable:$true] %s727
          %730 = dma.vmem_to_hbm [thread:$0]  %s728, 128, %s725, %s688
        $region68: #{tpu_custom_call.1} parent=39 // pred_fallthru
          _
      $region40: #{tpu_custom_call.1} parent=5 // pred_fallthru
        _
      %p731 = scmp.le.s32.totalorder 2, %s27
      // Predicated region
      $region69: #{tpu_custom_call.1} parent=5 // pred_check
        %p732 = pneg %p731
      $region70: #{tpu_custom_call.1} parent=5 // pred_check_branch
        %734 = sbr.rel (%p732) target = $region72
      $region71: #{tpu_custom_call.1} parent=5 // pred_region
        %s735 = ssub.s32 %s27, 2
        // Predicated region
        $region73: #{tpu_custom_call.1} parent=71 // pred_check
          %p736 = pneg %p176
        $region74: #{tpu_custom_call.1} parent=71 // pred_check_branch
          %738 = sbr.rel (%p736) target = $region76
        $region75: #{tpu_custom_call.1} parent=71 // pred_region
          %s739 = sand.u32 %s161, 1
          %s740 = scalar_lea.sflag [#allocation4], %s739
          %s741 = sand.u32 %s161, 1
          %s742 = smul.addr %s741, 8
          %s743 = scalar_lea.vmem [#allocation10], %s742
          %744 = dma.done %s740, 128
        $region76: #{tpu_custom_call.1} parent=71 // pred_fallthru
          _
        // Predicated region
        $region77: #{tpu_custom_call.1} parent=71 // pred_check
          %p745 = pneg %p202
        $region78: #{tpu_custom_call.1} parent=71 // pred_check_branch
          %747 = sbr.rel (%p745) target = $region80
        $region79: #{tpu_custom_call.1} parent=71 // pred_region
          %s748 = sand.u32 %s33, 1
          %s749 = scalar_lea.sflag [#allocation12], %s748
          %s750 = sand.u32 %s187, 1
          %s751 = smul.addr %s750, 8
          %s752 = scalar_lea.vmem [#allocation11], %s751
          %753 = dma.done %s749, 128
        $region80: #{tpu_custom_call.1} parent=71 // pred_fallthru
          _
        // Predicated region
        $region81: #{tpu_custom_call.1} parent=71 // pred_check
          %p754 = pneg %p228
        $region82: #{tpu_custom_call.1} parent=71 // pred_check_branch
          %756 = sbr.rel (%p754) target = $region84
        $region83: #{tpu_custom_call.1} parent=71 // pred_region
          %s757 = sand.u32 %s33, 1
          %s758 = scalar_lea.sflag [#allocation12], %s757
          %s759 = sand.u32 %s213, 1
          %s760 = smul.addr %s759, 8
          %s761 = scalar_lea.vmem [#allocation13], %s760
          %762 = dma.done %s758, 128
        $region84: #{tpu_custom_call.1} parent=71 // pred_fallthru
          _
      $region72: #{tpu_custom_call.1} parent=5 // pred_fallthru
        _
    $region6: #{tpu_custom_call.1} parent=1 // loop_footer
      %s31 = sadd.s32 1, %s27
    $region7: #{tpu_custom_call.1} parent=1 // loop_footer_branch
      %26 = sbr.rel target = $region3
    $region8: #{tpu_custom_call.1} parent=1 // loop_exit
      _
    %763 = vsyncpa [#allocation3], 1
    %s764 = scalar_lea.sflag [#allocation3], 1
    %765 = vsyncpa %s764, 1
    %766 = vsyncpa [#allocation6], 1
    %s767 = scalar_lea.sflag [#allocation6], 1
    %768 = vsyncpa %s767, 1
    %769 = vsyncpa [#allocation9], 1
    %770 = vsyncpa [#allocation4], 1
    %s771 = scalar_lea.sflag [#allocation4], 1
    %772 = vsyncpa %s771, 1
    %773 = vsyncpa [#allocation12], 1
    %s774 = scalar_lea.sflag [#allocation12], 1
    %775 = vsyncpa %s774, 1

</llo_original>
